<compile_context>
chip_gen: v6e
topology: v6e:2x2x1
jax: 0.10.0
libtpu: 0.0.40
codegen_flags: <defaults>
</compile_context>

<pallas_src>
import jax
import jax.numpy as jnp
from jax.experimental import pallas as pl
from jax.experimental.pallas import tpu as pltpu


def _round_up(n, m):
    return ((n + m - 1) // m) * m


def highway_kernel(x_ref, w_ref, b_ref, out_ref, x_buf):
    """One grid step: advance the carried activation through k fused layers.

    x_ref   : (TB, S_pad)          input activation block (read at lstep==0)
    w_ref   : (k, S_pad, 3*S_pad)  fused [gate|nonlinear|linear] weights (in,out)
    b_ref   : (k, 1, 3*S_pad)      fused biases, f32
    out_ref : (TB, S_pad)          written only on the last layer step
    x_buf   : (TB, S_pad) f32      VMEM carry across the sequential layer axis
    """
    lstep = pl.program_id(1)

    # Load the initial activation into the carried VMEM buffer once per batch
    # tile (the layer axis restarts at 0 for every batch tile).
    @pl.when(lstep == 0)
    def _():
        x_buf[...] = x_ref[...].astype(jnp.float32)

    k = w_ref.shape[0]        # layers fused into this grid step (static)
    s_pad = w_ref.shape[1]    # padded feature size (static)

    def layer(j, x):
        w = w_ref[j]                               # (S_pad, 3*S_pad), param dtype
        b = b_ref[j]                               # (1, 3*S_pad), f32
        # Single fused MXU push; columns [0:S)=gate, [S:2S)=nonlinear, [2S:3S)=linear.
        # f32 accumulation regardless of the (bf16) param dtype.
        y = jnp.dot(x.astype(w.dtype), w,
                    preferred_element_type=jnp.float32) + b
        gate = jax.nn.sigmoid(y[:, :s_pad])
        nonlinear = jnp.maximum(y[:, s_pad:2 * s_pad], 0.0)   # f = ReLU
        linear = y[:, 2 * s_pad:]
        # gate*nonlinear + (1-gate)*linear == linear + gate*(nonlinear - linear)
        return linear + gate * (nonlinear - linear)

    # fori_loop(unroll=True) keeps LLO visibility while bounding each layer's
    # (TB, 3*S_pad) f32 intermediate live range (a static Python `for` would not).
    x = jax.lax.fori_loop(0, k, layer, x_buf[...], unroll=True)
    x_buf[...] = x

    # Only the final layer step materializes the output block.
    @pl.when(lstep == pl.num_programs(1) - 1)
    def _():
        out_ref[...] = x.astype(out_ref.dtype)


def _tpu_vmem_budgets():
    """Per-generation VMEM request ceiling and weight-slab budget (bytes)."""
    try:
        vmem_cap = int(pltpu.get_tpu_info().vmem_capacity_bytes)
    except Exception:
        vmem_cap = 64 << 20     # conservative fallback (v7x-sized)
    if vmem_cap <= (64 << 20):  # v7x-class: 64 MiB physical per TensorCore
        return 52 << 20, 28 << 20
    # v5e / v6e: 128 MiB physical
    return 104 << 20, 56 << 20


def highway(x, w_gate, b_gate, w_nonlin, b_nonlin, w_lin, b_lin,
            *, param_dtype=jnp.bfloat16, layers_per_step=None, batch_tile=None):
    """x: (B, S); weights: (L, S, S) in PyTorch (out, in) layout; biases: (L, S).

    param_dtype controls the storage/MXU dtype of the weights (default bf16:
    halves weight HBM traffic and uses the native single-pass MXU path).
    Pass param_dtype=jnp.float32 (or None to keep the original dtype) for a
    bit-tighter numerical match.  Accumulation is always f32.
    """
    B, S = x.shape
    L = w_gate.shape[0]

    s_pad = _round_up(S, 128)                      # lane-dense feature dim

    b8 = _round_up(B, 8)
    if batch_tile is None:
        # Prefer a single batch tile: with the layer axis inner, >1 batch tile
        # re-streams the weight stack per tile (unless L//k == 1, in which case
        # the constant weight block index avoids the re-fetch anyway).
        tb = b8 if b8 <= 512 else 256
    else:
        tb = max(8, _round_up(batch_tile, 8))
    b_pad = _round_up(B, tb)

    wdt = jnp.dtype(param_dtype if param_dtype is not None else w_gate.dtype)
    wbytes = wdt.itemsize

    def prep_w(w):
        # (L, out, in) -> (L, in, out), zero-pad both feature dims to S_pad.
        wt = jnp.transpose(w, (0, 2, 1))
        wt = jnp.pad(wt, ((0, 0), (0, s_pad - S), (0, s_pad - S)))
        return wt.astype(wdt)

    def prep_b(b):
        # Biases stay f32: negligible traffic, no precision loss, no per-layer cast.
        bp = jnp.pad(b, ((0, 0), (0, s_pad - S)))
        return bp.reshape(L, 1, s_pad).astype(jnp.float32)

    # Fuse gate / nonlinear / linear along the output-feature axis.
    w_cat = jnp.concatenate([prep_w(w_gate), prep_w(w_nonlin), prep_w(w_lin)],
                            axis=-1)               # (L, S_pad, 3*S_pad)
    b_cat = jnp.concatenate([prep_b(b_gate), prep_b(b_nonlin), prep_b(b_lin)],
                            axis=-1)               # (L, 1, 3*S_pad)

    # Input stays in its original dtype; the kernel casts the f32 carry to the
    # weight dtype only for the MXU operands.
    x_pad = jnp.pad(x, ((0, b_pad - B), (0, s_pad - S)))

    vmem_ceiling, w_budget = _tpu_vmem_budgets()

    # Layers per grid step: largest divisor of L whose double-buffered fused
    # weight slab stays under the generation-aware budget.
    one_layer_w = s_pad * 3 * s_pad * wbytes
    if layers_per_step is None:
        k = 1
        for cand in range(L, 0, -1):
            if L % cand == 0 and 2 * cand * one_layer_w <= w_budget:
                k = cand
                break
        # TODO(synk): for very large S (2 * one_layer_w > budget, e.g. S>=2048
        # bf16 on v7x) the fused output dimension should be column-tiled into
        # self-contained [gate|nonlin|lin] x 128 groups; not implemented here.
    else:
        k = layers_per_step
        assert L % k == 0, "layers_per_step must divide num_layers"

    grid = (b_pad // tb, L // k)

    x_spec = pl.BlockSpec((tb, s_pad), lambda bi, li: (bi, 0))
    w_spec = pl.BlockSpec((k, s_pad, 3 * s_pad), lambda bi, li: (li, 0, 0))
    b_spec = pl.BlockSpec((k, 1, 3 * s_pad), lambda bi, li: (li, 0, 0))

    xb = jnp.dtype(x_pad.dtype).itemsize
    ob = jnp.dtype(x.dtype).itemsize
    needed = (2 * (k * one_layer_w                       # weight double buffer
                   + k * 3 * s_pad * 4                   # bias double buffer (f32)
                   + tb * s_pad * xb                     # x double buffer
                   + tb * s_pad * ob)                    # out double buffer
              + tb * s_pad * 4                           # f32 carry scratch
              + tb * 3 * s_pad * 4)                      # in-kernel f32 y tile
    vmem_limit = int(min(vmem_ceiling, max(32 << 20, needed + needed // 2)))

    out = pl.pallas_call(
        highway_kernel,
        out_shape=jax.ShapeDtypeStruct((b_pad, s_pad), x.dtype),
        grid_spec=pltpu.PrefetchScalarGridSpec(
            num_scalar_prefetch=0,
            grid=grid,
            in_specs=[x_spec, w_spec, b_spec],
            out_specs=x_spec,
            scratch_shapes=[pltpu.VMEM((tb, s_pad), jnp.float32)],
        ),
        compiler_params=pltpu.CompilerParams(
            dimension_semantics=("parallel", "arbitrary"),
            vmem_limit_bytes=vmem_limit),
    )(x_pad, w_cat, b_cat)

    return out[:B, :S]


def highway_ref(x, w_gate, b_gate, w_nonlin, b_nonlin, w_lin, b_lin):
    """Pure-JAX reference mirroring the PyTorch forward (f = ReLU)."""
    L = w_gate.shape[0]
    for l in range(L):
        gate = jax.nn.sigmoid(x @ w_gate[l].T + b_gate[l])
        nonlinear = jax.nn.relu(x @ w_nonlin[l].T + b_nonlin[l])
        linear = x @ w_lin[l].T + b_lin[l]
        x = gate * nonlinear + (1.0 - gate) * linear
    return x


if __name__ == "__main__":
    size = 32
    num_layers = 2
    batch = 8

    key = jax.random.PRNGKey(0)
    ks = jax.random.split(key, 7)
    # Deterministic synthetic parameters (roughly nn.Linear init scale).
    scale = 1.0 / jnp.sqrt(size)
    x = jax.random.normal(ks[0], (batch, size), dtype=jnp.float32)
    w_gate = jax.random.uniform(ks[1], (num_layers, size, size),
                                minval=-scale, maxval=scale, dtype=jnp.float32)
    b_gate = jax.random.uniform(ks[2], (num_layers, size),
                                minval=-scale, maxval=scale, dtype=jnp.float32)
    w_nonlin = jax.random.uniform(ks[3], (num_layers, size, size),
                                  minval=-scale, maxval=scale, dtype=jnp.float32)
    b_nonlin = jax.random.uniform(ks[4], (num_layers, size),
                                  minval=-scale, maxval=scale, dtype=jnp.float32)
    w_lin = jax.random.uniform(ks[5], (num_layers, size, size),
                               minval=-scale, maxval=scale, dtype=jnp.float32)
    b_lin = jax.random.uniform(ks[6], (num_layers, size),
                               minval=-scale, maxval=scale, dtype=jnp.float32)

    ref = highway_ref(x, w_gate, b_gate, w_nonlin, b_nonlin, w_lin, b_lin)

    # Exact-precision path (f32 weights on the MXU): tight tolerance.
    out_f32 = highway(x, w_gate, b_gate, w_nonlin, b_nonlin, w_lin, b_lin,
                      param_dtype=jnp.float32)
    out_f32 = jax.block_until_ready(out_f32)
    assert out_f32.shape == ref.shape, "shape mismatch vs reference (f32 path)"
    assert jnp.allclose(out_f32, ref, atol=2e-5, rtol=2e-5), \
        "mismatch vs reference (f32 path)"

    # Default perf path (bf16 weights + bf16 MXU operands, f32 accumulation).
    out_bf16 = highway(x, w_gate, b_gate, w_nonlin, b_nonlin, w_lin, b_lin)
    out_bf16 = jax.block_until_ready(out_bf16)
    assert out_bf16.shape == ref.shape, "shape mismatch vs reference (bf16 path)"
    assert jnp.allclose(out_bf16, ref, atol=5e-2, rtol=5e-2), \
        "mismatch vs reference (bf16 path)"

    print("KERNEL_OK")
</pallas_src>

<mosaic_0001>
module attributes {stable_mosaic.version = 11 : i64} {
  func.func @highway_kernel(%arg0: i32, %arg1: i32, %arg2: memref<8x128xf32, #tpu.memory_space<vmem>>, %arg3: memref<2x128x384xf32, #tpu.memory_space<vmem>>, %arg4: memref<2x1x384xf32, #tpu.memory_space<vmem>>, %arg5: memref<8x128xf32, #tpu.memory_space<vmem>>, %arg6: memref<8x128xf32, #tpu.memory_space<vmem>>) attributes {dimension_semantics = [#tpu.dimension_semantics<parallel>, #tpu.dimension_semantics<arbitrary>], iteration_bounds = array<i64: 1, 1>, scalar_prefetch = 0 : i64, scratch_operands = 1 : i64, tpu.core_type = #tpu.core_type<tc>, window_params = [{transform_indices = @transform_0, window_bounds = array<i64: 8, 128>}, {transform_indices = @transform_1, window_bounds = array<i64: 2, 128, 384>}, {transform_indices = @transform_2, window_bounds = array<i64: 2, 1, 384>}, {transform_indices = @transform_3, window_bounds = array<i64: 8, 128>}]} {
    %c0_i32 = arith.constant 0 : i32
    %0 = arith.cmpi eq, %arg1, %c0_i32 : i32
    %1 = arith.extui %0 : i1 to i32
    %c0_i32_0 = arith.constant 0 : i32
    %2 = arith.cmpi ne, %1, %c0_i32_0 : i32
    scf.if %2 {
      %c0_20 = arith.constant 0 : index
      %c0_21 = arith.constant 0 : index
      %52 = vector.load %arg2[%c0_20, %c0_21] : memref<8x128xf32, #tpu.memory_space<vmem>>, vector<8x128xf32>
      %c0_22 = arith.constant 0 : index
      %c0_23 = arith.constant 0 : index
      %53 = vector.load %arg6[%c0_22, %c0_23] : memref<8x128xf32, #tpu.memory_space<vmem>>, vector<8x128xf32>
      tpu.vector_store %arg6[%c0_22, %c0_23], %52 {strides = array<i32>} : memref<8x128xf32, #tpu.memory_space<vmem>>, vector<8x128xf32>,
    } else {
    }
    %c0 = arith.constant 0 : index
    %c0_1 = arith.constant 0 : index
    %3 = vector.load %arg6[%c0, %c0_1] : memref<8x128xf32, #tpu.memory_space<vmem>>, vector<8x128xf32>
    %c0_i32_2 = arith.constant 0 : i32
    %4 = arith.index_cast %c0_i32_2 : i32 to index
    %c0_3 = arith.constant 0 : index
    %c0_4 = arith.constant 0 : index
    %5 = vector.load %arg3[%4, %c0_3, %c0_4] : memref<2x128x384xf32, #tpu.memory_space<vmem>>, vector<1x128x384xf32>
    %6 = vector.shape_cast %5 : vector<1x128x384xf32> to vector<128x384xf32>
    %7 = arith.index_cast %c0_i32_2 : i32 to index
    %c0_5 = arith.constant 0 : index
    %c0_6 = arith.constant 0 : index
    %8 = vector.load %arg4[%7, %c0_5, %c0_6] : memref<2x1x384xf32, #tpu.memory_space<vmem>>, vector<1x1x384xf32>
    %9 = vector.shape_cast %8 : vector<1x1x384xf32> to vector<1x384xf32>
    %cst = arith.constant dense<0.000000e+00> : vector<8x384xf32>
    %10 = tpu.matmul %3, %6, %cst {dimension_numbers = #tpu.dot_dimension_numbers<[1], [0], [0], [1], [0, 0, 1, 1], [], []>} : vector<8x128xf32>, vector<128x384xf32>, vector<8x384xf32> -> vector<8x384xf32>
    %11 = vector.broadcast %9 : vector<1x384xf32> to vector<8x384xf32>
    %12 = arith.addf %10, %11 : vector<8x384xf32>
    %13 = vector.extract_strided_slice %12 {offsets = [0, 0], sizes = [8, 128], strides = [1, 1]} : vector<8x384xf32> to vector<8x128xf32>
    %14 = arith.negf %13 : vector<8x128xf32>
    %15 = math.exp %14 : vector<8x128xf32>
    %cst_7 = arith.constant 1.000000e+00 : f32
    %16 = vector.broadcast %cst_7 : f32 to vector<8x128xf32>
    %17 = arith.addf %16, %15 : vector<8x128xf32>
    %18 = arith.divf %16, %17 : vector<8x128xf32>
    %19 = vector.extract_strided_slice %12 {offsets = [0, 128], sizes = [8, 128], strides = [1, 1]} : vector<8x384xf32> to vector<8x128xf32>
    %cst_8 = arith.constant 0.000000e+00 : f32
    %20 = vector.broadcast %cst_8 : f32 to vector<8x128xf32>
    %21 = arith.maximumf %19, %20 : vector<8x128xf32>
    %22 = vector.extract_strided_slice %12 {offsets = [0, 256], sizes = [8, 128], strides = [1, 1]} : vector<8x384xf32> to vector<8x128xf32>
    %23 = arith.subf %21, %22 : vector<8x128xf32>
    %24 = arith.mulf %18, %23 : vector<8x128xf32>
    %25 = arith.addf %22, %24 : vector<8x128xf32>
    %c1_i32 = arith.constant 1 : i32
    %26 = arith.index_cast %c1_i32 : i32 to index
    %c0_9 = arith.constant 0 : index
    %c0_10 = arith.constant 0 : index
    %27 = vector.load %arg3[%26, %c0_9, %c0_10] : memref<2x128x384xf32, #tpu.memory_space<vmem>>, vector<1x128x384xf32>
    %28 = vector.shape_cast %27 : vector<1x128x384xf32> to vector<128x384xf32>
    %29 = arith.index_cast %c1_i32 : i32 to index
    %c0_11 = arith.constant 0 : index
    %c0_12 = arith.constant 0 : index
    %30 = vector.load %arg4[%29, %c0_11, %c0_12] : memref<2x1x384xf32, #tpu.memory_space<vmem>>, vector<1x1x384xf32>
    %31 = vector.shape_cast %30 : vector<1x1x384xf32> to vector<1x384xf32>
    %cst_13 = arith.constant dense<0.000000e+00> : vector<8x384xf32>
    %32 = tpu.matmul %25, %28, %cst_13 {dimension_numbers = #tpu.dot_dimension_numbers<[1], [0], [0], [1], [0, 0, 1, 1], [], []>} : vector<8x128xf32>, vector<128x384xf32>, vector<8x384xf32> -> vector<8x384xf32>
    %33 = vector.broadcast %31 : vector<1x384xf32> to vector<8x384xf32>
    %34 = arith.addf %32, %33 : vector<8x384xf32>
    %35 = vector.extract_strided_slice %34 {offsets = [0, 0], sizes = [8, 128], strides = [1, 1]} : vector<8x384xf32> to vector<8x128xf32>
    %36 = arith.negf %35 : vector<8x128xf32>
    %37 = math.exp %36 : vector<8x128xf32>
    %cst_14 = arith.constant 1.000000e+00 : f32
    %38 = vector.broadcast %cst_14 : f32 to vector<8x128xf32>
    %39 = arith.addf %38, %37 : vector<8x128xf32>
    %40 = arith.divf %38, %39 : vector<8x128xf32>
    %41 = vector.extract_strided_slice %34 {offsets = [0, 128], sizes = [8, 128], strides = [1, 1]} : vector<8x384xf32> to vector<8x128xf32>
    %cst_15 = arith.constant 0.000000e+00 : f32
    %42 = vector.broadcast %cst_15 : f32 to vector<8x128xf32>
    %43 = arith.maximumf %41, %42 : vector<8x128xf32>
    %44 = vector.extract_strided_slice %34 {offsets = [0, 256], sizes = [8, 128], strides = [1, 1]} : vector<8x384xf32> to vector<8x128xf32>
    %45 = arith.subf %43, %44 : vector<8x128xf32>
    %46 = arith.mulf %40, %45 : vector<8x128xf32>
    %47 = arith.addf %44, %46 : vector<8x128xf32>
    %c2_i32 = arith.constant 2 : i32
    %c0_16 = arith.constant 0 : index
    %c0_17 = arith.constant 0 : index
    %48 = vector.load %arg6[%c0_16, %c0_17] : memref<8x128xf32, #tpu.memory_space<vmem>>, vector<8x128xf32>
    tpu.vector_store %arg6[%c0_16, %c0_17], %47 {strides = array<i32>} : memref<8x128xf32, #tpu.memory_space<vmem>>, vector<8x128xf32>,
    %c0_i32_18 = arith.constant 0 : i32
    %49 = arith.cmpi eq, %arg1, %c0_i32_18 : i32
    %50 = arith.extui %49 : i1 to i32
    %c0_i32_19 = arith.constant 0 : i32
    %51 = arith.cmpi ne, %50, %c0_i32_19 : i32
    scf.if %51 {
      %c0_20 = arith.constant 0 : index
      %c0_21 = arith.constant 0 : index
      %52 = vector.load %arg5[%c0_20, %c0_21] : memref<8x128xf32, #tpu.memory_space<vmem>>, vector<8x128xf32>
      tpu.vector_store %arg5[%c0_20, %c0_21], %47 {strides = array<i32>} : memref<8x128xf32, #tpu.memory_space<vmem>>, vector<8x128xf32>,
    } else {
    }
    return
  }
  func.func @transform_0(%arg0: i32, %arg1: i32) -> (i32, i32) {
    %c0_i32 = arith.constant 0 : i32
    %c0_i32_0 = arith.constant 0 : i32
    return %arg0, %c0_i32 : i32, i32
  }
  func.func @transform_1(%arg0: i32, %arg1: i32) -> (i32, i32, i32) {
    %c0_i32 = arith.constant 0 : i32
    %c0_i32_0 = arith.constant 0 : i32
    %c0_i32_1 = arith.constant 0 : i32
    return %arg1, %c0_i32, %c0_i32_0 : i32, i32, i32
  }
  func.func @transform_2(%arg0: i32, %arg1: i32) -> (i32, i32, i32) {
    %c0_i32 = arith.constant 0 : i32
    %c0_i32_0 = arith.constant 0 : i32
    %c0_i32_1 = arith.constant 0 : i32
    return %arg1, %c0_i32, %c0_i32_0 : i32, i32, i32
  }
  func.func @transform_3(%arg0: i32, %arg1: i32) -> (i32, i32) {
    %c0_i32 = arith.constant 0 : i32
    %c0_i32_0 = arith.constant 0 : i32
    return %arg0, %c0_i32 : i32, i32
  }
}

</mosaic_0001>

<llo_original>
// kernel: tpu_custom_call.1
$region0: #{tpu_custom_call.1}
  #allocation0 [shape = 'u32[]', space=smem, size = 0x4, offset = 0x4, fixed_abs, tag = 'smem constant byte address 0x4 - core index']
  #allocation1 [shape = 'u32[144,128]{1,0:T(1,128)}', space=vmem, size = 0x12000, scoped, tag = 'internal scratch']
  #allocation2 [shape = 'f32[8,128]{1,0:T(8,128)}', space=vmem, size = 0x1000, scoped, tag = 'scratch operand']
  %s0 = inlined_call_operand.hbm [shape: f32[8,128], index: 0, kind: input, shape index: {}]
  %s1 = inlined_call_operand.hbm [shape: f32[2,128,384], index: 1, kind: input, shape index: {}]
  %s2 = inlined_call_operand.hbm [shape: f32[2,1,384], index: 2, kind: input, shape index: {}]
  %s3 = inlined_call_operand.hbm [shape: f32[8,128], index: 3, kind: output, shape index: {}]
  %s4 = sld [smem:[#allocation0]]
  $region42: #{tpu_custom_call.1} parent=0
    _
  %s6 = ssub.s32 1, %s4
  %s7 = scalar_select 0, %s6, %s4
  $region1: #{tpu_custom_call.1} parent=0
    #allocation3 [shape = 'u8[4096]{0}', space=vmem, size = 0x1000, scoped, tag = 'input window, operand 0, single buffered']
    #allocation4 [shape = 's32[1]{0}', space=sflag, size = 0x4, scoped, tag = 'scoped memory for tpu_custom_call.1']
    #allocation5 [shape = 's32[1]{0}', space=sflag, size = 0x4, scoped, tag = 'scoped memory for tpu_custom_call.1']
    #allocation6 [shape = 'u8[393216]{0}', space=vmem, size = 0x60000, scoped, tag = 'input window, operand 1, single buffered']
    #allocation7 [shape = 's32[1]{0}', space=sflag, size = 0x4, scoped, tag = 'scoped memory for tpu_custom_call.1']
    #allocation8 [shape = 'u8[3072]{0}', space=vmem, size = 0xc00, scoped, tag = 'input window, operand 2, single buffered']
    #allocation9 [shape = 'u8[4096]{0}', space=vmem, size = 0x1000, scoped, tag = 'output window, operand 0, single buffered']
    %8 = vsyncpa [#allocation4], 0
    %9 = vsyncpa [#allocation7], 0
    %10 = vsyncpa [#allocation5], 0
    // Predicated region
    $region2: #{tpu_custom_call.1} parent=1 // pred_check
      _
    $region3: #{tpu_custom_call.1} parent=1 // pred_check_branch
      %12 = sbr.rel (0) target = $region5
    $region4: #{tpu_custom_call.1} parent=1 // pred_region
      %s14 = ssub.s32 128, 128
      %15 = vsyncadd [#allocation4], %s14
      %s17 = sshll.u32 [#allocation3], 4
      %s18 = int_to_ptr.vmem [resolvable:$true] %s17
      %20 = dma.hbm_to_vmem [thread:$0]  %s0, 128, %s18, [#allocation4]
    $region5: #{tpu_custom_call.1} parent=1 // pred_fallthru
      _
    // Predicated region
    $region6: #{tpu_custom_call.1} parent=1 // pred_check
      _
    $region7: #{tpu_custom_call.1} parent=1 // pred_check_branch
      %22 = sbr.rel (0) target = $region9
    $region8: #{tpu_custom_call.1} parent=1 // pred_region
      %s24 = ssub.s32 12288, 12288
      %25 = vsyncadd [#allocation7], %s24
      %s26 = sshll.u32 [#allocation6], 4
      %s27 = int_to_ptr.vmem [resolvable:$true] %s26
      %32 = dma.hbm_to_vmem [thread:$0]  %s1, 12288, %s27, [#allocation7], 384, 384, 24
    $region9: #{tpu_custom_call.1} parent=1 // pred_fallthru
      _
    // Predicated region
    $region10: #{tpu_custom_call.1} parent=1 // pred_check
      _
    $region11: #{tpu_custom_call.1} parent=1 // pred_check_branch
      %34 = sbr.rel (0) target = $region13
    $region12: #{tpu_custom_call.1} parent=1 // pred_region
      %s36 = ssub.s32 96, 96
      %37 = vsyncadd [#allocation7], %s36
      %s38 = sshll.u32 [#allocation8], 4
      %s39 = int_to_ptr.vmem [resolvable:$true] %s38
      %44 = dma.hbm_to_vmem [thread:$0]  %s2, 96, %s39, [#allocation7], 48, 48, 3
    $region13: #{tpu_custom_call.1} parent=1 // pred_fallthru
      _
    // Predicated region
    $region14: #{tpu_custom_call.1} parent=1 // pred_check
      _
    $region15: #{tpu_custom_call.1} parent=1 // pred_check_branch
      %46 = sbr.rel (0) target = $region17
    $region16: #{tpu_custom_call.1} parent=1 // pred_region
      %47 = dma.done [#allocation4], 128
    $region17: #{tpu_custom_call.1} parent=1 // pred_fallthru
      _
    // Predicated region
    $region18: #{tpu_custom_call.1} parent=1 // pred_check
      _
    $region19: #{tpu_custom_call.1} parent=1 // pred_check_branch
      %49 = sbr.rel (0) target = $region21
    $region20: #{tpu_custom_call.1} parent=1 // pred_region
      %50 = dma.done [#allocation7], 12288
    $region21: #{tpu_custom_call.1} parent=1 // pred_fallthru
      _
    // Predicated region
    $region22: #{tpu_custom_call.1} parent=1 // pred_check
      _
    $region23: #{tpu_custom_call.1} parent=1 // pred_check_branch
      %52 = sbr.rel (0) target = $region25
    $region24: #{tpu_custom_call.1} parent=1 // pred_region
      %53 = dma.done [#allocation7], 96
    $region25: #{tpu_custom_call.1} parent=1 // pred_fallthru
      _
    %p54 = scmp.eq.s32.totalorder 0, 0
    // Predicated region
    $region26: #{tpu_custom_call.1} parent=1 // pred_check
      %p55 = pneg %p54
    $region27: #{tpu_custom_call.1} parent=1 // pred_check_branch
      %57 = sbr.rel (%p55) target = $region29
    $region28: #{tpu_custom_call.1} parent=1 // pred_region
      %v58 = vld [vmem:[#allocation3] sm:$0xff]
      %59 = vst [vmem:[#allocation2] sm:$0xff] %v58
    $region29: #{tpu_custom_call.1} parent=1 // pred_fallthru
      _
    %v60 = vld [vmem:[#allocation2] sm:$0xff]
    %v61 = vld [vmem:[#allocation6] sm:$0xff]
    %v62 = vld [vmem:[#allocation6 + $0x8] sm:$0xff]
    %v63 = vld [vmem:[#allocation6 + $0x10] sm:$0xff]
    %v64 = vld [vmem:[#allocation6 + $0x18] sm:$0xff]
    %v65 = vld [vmem:[#allocation6 + $0x20] sm:$0xff]
    %v66 = vld [vmem:[#allocation6 + $0x28] sm:$0xff]
    %v67 = vld [vmem:[#allocation6 + $0x30] sm:$0xff]
    %v68 = vld [vmem:[#allocation6 + $0x38] sm:$0xff]
    %v69 = vld [vmem:[#allocation6 + $0x40] sm:$0xff]
    %v70 = vld [vmem:[#allocation6 + $0x48] sm:$0xff]
    %v71 = vld [vmem:[#allocation6 + $0x50] sm:$0xff]
    %v72 = vld [vmem:[#allocation6 + $0x58] sm:$0xff]
    %v73 = vld [vmem:[#allocation6 + $0x60] sm:$0xff]
    %v74 = vld [vmem:[#allocation6 + $0x68] sm:$0xff]
    %v75 = vld [vmem:[#allocation6 + $0x70] sm:$0xff]
    %v76 = vld [vmem:[#allocation6 + $0x78] sm:$0xff]
    %v77 = vld [vmem:[#allocation6 + $0x80] sm:$0xff]
    %v78 = vld [vmem:[#allocation6 + $0x88] sm:$0xff]
    %v79 = vld [vmem:[#allocation6 + $0x90] sm:$0xff]
    %v80 = vld [vmem:[#allocation6 + $0x98] sm:$0xff]
    %v81 = vld [vmem:[#allocation6 + $0xa0] sm:$0xff]
    %v82 = vld [vmem:[#allocation6 + $0xa8] sm:$0xff]
    %v83 = vld [vmem:[#allocation6 + $0xb0] sm:$0xff]
    %v84 = vld [vmem:[#allocation6 + $0xb8] sm:$0xff]
    %v85 = vld [vmem:[#allocation6 + $0xc0] sm:$0xff]
    %v86 = vld [vmem:[#allocation6 + $0xc8] sm:$0xff]
    %v87 = vld [vmem:[#allocation6 + $0xd0] sm:$0xff]
    %v88 = vld [vmem:[#allocation6 + $0xd8] sm:$0xff]
    %v89 = vld [vmem:[#allocation6 + $0xe0] sm:$0xff]
    %v90 = vld [vmem:[#allocation6 + $0xe8] sm:$0xff]
    %v91 = vld [vmem:[#allocation6 + $0xf0] sm:$0xff]
    %v92 = vld [vmem:[#allocation6 + $0xf8] sm:$0xff]
    %v93 = vld [vmem:[#allocation6 + $0x100] sm:$0xff]
    %v94 = vld [vmem:[#allocation6 + $0x108] sm:$0xff]
    %v95 = vld [vmem:[#allocation6 + $0x110] sm:$0xff]
    %v96 = vld [vmem:[#allocation6 + $0x118] sm:$0xff]
    %v97 = vld [vmem:[#allocation6 + $0x120] sm:$0xff]
    %v98 = vld [vmem:[#allocation6 + $0x128] sm:$0xff]
    %v99 = vld [vmem:[#allocation6 + $0x130] sm:$0xff]
    %v100 = vld [vmem:[#allocation6 + $0x138] sm:$0xff]
    %v101 = vld [vmem:[#allocation6 + $0x140] sm:$0xff]
    %v102 = vld [vmem:[#allocation6 + $0x148] sm:$0xff]
    %v103 = vld [vmem:[#allocation6 + $0x150] sm:$0xff]
    %v104 = vld [vmem:[#allocation6 + $0x158] sm:$0xff]
    %v105 = vld [vmem:[#allocation6 + $0x160] sm:$0xff]
    %v106 = vld [vmem:[#allocation6 + $0x168] sm:$0xff]
    %v107 = vld [vmem:[#allocation6 + $0x170] sm:$0xff]
    %v108 = vld [vmem:[#allocation6 + $0x178] sm:$0xff]
    %v109 = vld [vmem:[#allocation8] sm:$0x7]
    %v111 = vlaneseq
    %v112 = vshrl.u32 %v111, 7
    %v113 = vsub.s32 0, %v112
    %v114 = vrot.slane %v109, %v113
    %v115 = vlaneseq
    %v116 = vshrl.u32 %v115, 7
    %v117 = vsub.s32 1, %v116
    %v118 = vrot.slane %v109, %v117
    %v119 = vlaneseq
    %v120 = vshrl.u32 %v119, 7
    %v121 = vsub.s32 2, %v120
    %v122 = vrot.slane %v109, %v121
    %126 = vmatprep.subr.mxu0 %v107
    %127 = vmatpush1.msra.mxu0 %v106
    %128 = vmatprep.subr.mxu0 %v104
    %129 = vmatpush1.msra.mxu0 %v103
    %130 = vmatprep.subr.mxu0 %v101
    %131 = vmatpush1.msra.mxu0 %v100
    %132 = vmatprep.subr.mxu0 %v98
    %133 = vmatpush1.msra.mxu0 %v97
    %134 = vmatprep.subr.mxu0 %v95
    %135 = vmatpush1.msra.mxu0 %v94
    %136 = vmatprep.subr.mxu0 %v92
    %137 = vmatpush1.msra.mxu0 %v91
    %138 = vmatprep.subr.mxu0 %v89
    %139 = vmatpush1.msra.mxu0 %v88
    %140 = vmatprep.subr.mxu0 %v86
    %141 = vmatpush1.msra.mxu0 %v85
    %142 = vmatprep.subr.mxu0 %v83
    %143 = vmatpush1.msra.mxu0 %v82
    %144 = vmatprep.subr.mxu0 %v80
    %145 = vmatpush1.msra.mxu0 %v79
    %146 = vmatprep.subr.mxu0 %v77
    %147 = vmatpush1.msra.mxu0 %v76
    %148 = vmatprep.subr.mxu0 %v74
    %149 = vmatpush1.msra.mxu0 %v73
    %150 = vmatprep.subr.mxu0 %v71
    %151 = vmatpush1.msra.mxu0 %v70
    %152 = vmatprep.subr.mxu0 %v68
    %153 = vmatpush1.msra.mxu0 %v67
    %154 = vmatprep.subr.mxu0 %v65
    %155 = vmatpush1.msra.mxu0 %v64
    %156 = vmatprep.subr.mxu0 %v62
    %157 = vmatpush1.msra.mxu0 %v61
    %158 = vmatprep.subr.mxu0 0.0
    %159 = vmatpush2.msra.mxu0 0.0
    %160 = vmatprep.subr.mxu0 0.0
    %161 = vmatpush2.msra.mxu0 0.0
    %162 = vmatprep.subr.mxu0 0.0
    %163 = vmatpush2.msra.mxu0 0.0
    %164 = vmatprep.subr.mxu0 0.0
    %165 = vmatpush2.msra.mxu0 0.0
    %166 = vmatprep.subr.mxu0 0.0
    %167 = vmatpush2.msra.mxu0 0.0
    %168 = vmatprep.subr.mxu0 0.0
    %169 = vmatpush2.msra.mxu0 0.0
    %170 = vmatprep.subr.mxu0 0.0
    %171 = vmatpush2.msra.mxu0 0.0
    %172 = vmatprep.subr.mxu0 0.0
    %173 = vmatpush2.msra.mxu0 0.0
    %174 = vmatprep.subr.mxu0 0.0
    %175 = vmatpush2.msra.mxu0 0.0
    %176 = vmatprep.subr.mxu0 0.0
    %177 = vmatpush2.msra.mxu0 0.0
    %178 = vmatprep.subr.mxu0 0.0
    %179 = vmatpush2.msra.mxu0 0.0
    %180 = vmatprep.subr.mxu0 0.0
    %181 = vmatpush2.msra.mxu0 0.0
    %182 = vmatprep.subr.mxu0 0.0
    %183 = vmatpush2.msra.mxu0 0.0
    %184 = vmatprep.subr.mxu0 0.0
    %185 = vmatpush2.msra.mxu0 0.0
    %186 = vmatprep.subr.mxu0 0.0
    %187 = vmatpush2.msra.mxu0 0.0
    %188 = vmatprep.subr.mxu0 0.0
    %189 = vmatpush2.msra.mxu0 0.0
    %190 = vmatprep.mubr.f32.mxu0 0.0
    %191 = vmatmul.mubr.f32.gmra.mxu0 %v60
    %v192 = vpop.f32.mrf.mxu0
    %v193 = vadd.f32 %v114, %v192
    %v194 = vpop.f32.mrf.mxu0
    %v195 = vadd.f32 %v118, %v194
    %196 = vdwg.mxu0
    %197 = vmatprep.subr.mxu0 0.0
    %198 = vmatpush1.msra.mxu0 %v108
    %199 = vmatprep.subr.mxu0 0.0
    %200 = vmatpush1.msra.mxu0 %v105
    %201 = vmatprep.subr.mxu0 0.0
    %202 = vmatpush1.msra.mxu0 %v102
    %203 = vmatprep.subr.mxu0 0.0
    %204 = vmatpush1.msra.mxu0 %v99
    %205 = vmatprep.subr.mxu0 0.0
    %206 = vmatpush1.msra.mxu0 %v96
    %207 = vmatprep.subr.mxu0 0.0
    %208 = vmatpush1.msra.mxu0 %v93
    %209 = vmatprep.subr.mxu0 0.0
    %210 = vmatpush1.msra.mxu0 %v90
    %211 = vmatprep.subr.mxu0 0.0
    %212 = vmatpush1.msra.mxu0 %v87
    %213 = vmatprep.subr.mxu0 0.0
    %214 = vmatpush1.msra.mxu0 %v84
    %215 = vmatprep.subr.mxu0 0.0
    %216 = vmatpush1.msra.mxu0 %v81
    %217 = vmatprep.subr.mxu0 0.0
    %218 = vmatpush1.msra.mxu0 %v78
    %219 = vmatprep.subr.mxu0 0.0
    %220 = vmatpush1.msra.mxu0 %v75
    %221 = vmatprep.subr.mxu0 0.0
    %222 = vmatpush1.msra.mxu0 %v72
    %223 = vmatprep.subr.mxu0 0.0
    %224 = vmatpush1.msra.mxu0 %v69
    %225 = vmatprep.subr.mxu0 0.0
    %226 = vmatpush1.msra.mxu0 %v66
    %227 = vmatprep.subr.mxu0 0.0
    %228 = vmatpush1.msra.mxu0 %v63
    %229 = vmatprep.subr.mxu0 0.0
    %230 = vmatpush2.msra.mxu0 0.0
    %231 = vmatprep.subr.mxu0 0.0
    %232 = vmatpush2.msra.mxu0 0.0
    %233 = vmatprep.subr.mxu0 0.0
    %234 = vmatpush2.msra.mxu0 0.0
    %235 = vmatprep.subr.mxu0 0.0
    %236 = vmatpush2.msra.mxu0 0.0
    %237 = vmatprep.subr.mxu0 0.0
    %238 = vmatpush2.msra.mxu0 0.0
    %239 = vmatprep.subr.mxu0 0.0
    %240 = vmatpush2.msra.mxu0 0.0
    %241 = vmatprep.subr.mxu0 0.0
    %242 = vmatpush2.msra.mxu0 0.0
    %243 = vmatprep.subr.mxu0 0.0
    %244 = vmatpush2.msra.mxu0 0.0
    %245 = vmatprep.subr.mxu0 0.0
    %246 = vmatpush2.msra.mxu0 0.0
    %247 = vmatprep.subr.mxu0 0.0
    %248 = vmatpush2.msra.mxu0 0.0
    %249 = vmatprep.subr.mxu0 0.0
    %250 = vmatpush2.msra.mxu0 0.0
    %251 = vmatprep.subr.mxu0 0.0
    %252 = vmatpush2.msra.mxu0 0.0
    %253 = vmatprep.subr.mxu0 0.0
    %254 = vmatpush2.msra.mxu0 0.0
    %255 = vmatprep.subr.mxu0 0.0
    %256 = vmatpush2.msra.mxu0 0.0
    %257 = vmatprep.subr.mxu0 0.0
    %258 = vmatpush2.msra.mxu0 0.0
    %259 = vmatprep.subr.mxu0 0.0
    %260 = vmatpush2.msra.mxu0 0.0
    %261 = vmatprep.mubr.f32.mxu0 0.0
    %262 = vmatmul.mubr.f32.gmra.mxu0 %v60
    %v263 = vpop.f32.mrf.mxu0
    %v264 = vadd.f32 %v122, %v263
    %v265 = vpop.f32.mrf.mxu0
    %266 = vdwg.mxu0
    %v267 = vxor.u32 %v193, 2147483648
    %v268 = vmul.f32 %v267, 1.442695
    %v269 = vpow.pop %v268
    %v270 = vadd.f32 %v269, 1.0
    %v271 = vrcp.pop %v270
    %v272 = vmul.f32 1.0, %v271
    %v273 = vmax.f32 %v195, 0.0
    %v274 = vsub.f32 %v273, %v264
    %v275 = vmul.f32 %v272, %v274
    %v276 = vadd.f32 %v264, %v275
    %s277 = scalar_lea.vmem [#allocation6], 384
    %v278 = vld [vmem:[%s277] sm:$0xff]
    %v279 = vld [vmem:[%s277 + $0x8] sm:$0xff]
    %v280 = vld [vmem:[%s277 + $0x10] sm:$0xff]
    %v281 = vld [vmem:[%s277 + $0x18] sm:$0xff]
    %v282 = vld [vmem:[%s277 + $0x20] sm:$0xff]
    %v283 = vld [vmem:[%s277 + $0x28] sm:$0xff]
    %v284 = vld [vmem:[%s277 + $0x30] sm:$0xff]
    %v285 = vld [vmem:[%s277 + $0x38] sm:$0xff]
    %v286 = vld [vmem:[%s277 + $0x40] sm:$0xff]
    %v287 = vld [vmem:[%s277 + $0x48] sm:$0xff]
    %v288 = vld [vmem:[%s277 + $0x50] sm:$0xff]
    %v289 = vld [vmem:[%s277 + $0x58] sm:$0xff]
    %v290 = vld [vmem:[%s277 + $0x60] sm:$0xff]
    %v291 = vld [vmem:[%s277 + $0x68] sm:$0xff]
    %v292 = vld [vmem:[%s277 + $0x70] sm:$0xff]
    %v293 = vld [vmem:[%s277 + $0x78] sm:$0xff]
    %v294 = vld [vmem:[%s277 + $0x80] sm:$0xff]
    %v295 = vld [vmem:[%s277 + $0x88] sm:$0xff]
    %v296 = vld [vmem:[%s277 + $0x90] sm:$0xff]
    %v297 = vld [vmem:[%s277 + $0x98] sm:$0xff]
    %v298 = vld [vmem:[%s277 + $0xa0] sm:$0xff]
    %v299 = vld [vmem:[%s277 + $0xa8] sm:$0xff]
    %v300 = vld [vmem:[%s277 + $0xb0] sm:$0xff]
    %v301 = vld [vmem:[%s277 + $0xb8] sm:$0xff]
    %v302 = vld [vmem:[%s277 + $0xc0] sm:$0xff]
    %v303 = vld [vmem:[%s277 + $0xc8] sm:$0xff]
    %v304 = vld [vmem:[%s277 + $0xd0] sm:$0xff]
    %v305 = vld [vmem:[%s277 + $0xd8] sm:$0xff]
    %v306 = vld [vmem:[%s277 + $0xe0] sm:$0xff]
    %v307 = vld [vmem:[%s277 + $0xe8] sm:$0xff]
    %v308 = vld [vmem:[%s277 + $0xf0] sm:$0xff]
    %v309 = vld [vmem:[%s277 + $0xf8] sm:$0xff]
    %v310 = vld [vmem:[%s277 + $0x100] sm:$0xff]
    %v311 = vld [vmem:[%s277 + $0x108] sm:$0xff]
    %v312 = vld [vmem:[%s277 + $0x110] sm:$0xff]
    %v313 = vld [vmem:[%s277 + $0x118] sm:$0xff]
    %v314 = vld [vmem:[%s277 + $0x120] sm:$0xff]
    %v315 = vld [vmem:[%s277 + $0x128] sm:$0xff]
    %v316 = vld [vmem:[%s277 + $0x130] sm:$0xff]
    %v317 = vld [vmem:[%s277 + $0x138] sm:$0xff]
    %v318 = vld [vmem:[%s277 + $0x140] sm:$0xff]
    %v319 = vld [vmem:[%s277 + $0x148] sm:$0xff]
    %v320 = vld [vmem:[%s277 + $0x150] sm:$0xff]
    %v321 = vld [vmem:[%s277 + $0x158] sm:$0xff]
    %v322 = vld [vmem:[%s277 + $0x160] sm:$0xff]
    %v323 = vld [vmem:[%s277 + $0x168] sm:$0xff]
    %v324 = vld [vmem:[%s277 + $0x170] sm:$0xff]
    %v325 = vld [vmem:[%s277 + $0x178] sm:$0xff]
    %s326 = scalar_lea.vmem [#allocation8], 3
    %v327 = vld [vmem:[%s326] sm:$0x7]
    %v329 = vlaneseq
    %v330 = vshrl.u32 %v329, 7
    %v331 = vsub.s32 0, %v330
    %v332 = vrot.slane %v327, %v331
    %v333 = vlaneseq
    %v334 = vshrl.u32 %v333, 7
    %v335 = vsub.s32 1, %v334
    %v336 = vrot.slane %v327, %v335
    %v337 = vlaneseq
    %v338 = vshrl.u32 %v337, 7
    %v339 = vsub.s32 2, %v338
    %v340 = vrot.slane %v327, %v339
    %344 = vmatprep.subr.mxu0 %v324
    %345 = vmatpush1.msra.mxu0 %v323
    %346 = vmatprep.subr.mxu0 %v321
    %347 = vmatpush1.msra.mxu0 %v320
    %348 = vmatprep.subr.mxu0 %v318
    %349 = vmatpush1.msra.mxu0 %v317
    %350 = vmatprep.subr.mxu0 %v315
    %351 = vmatpush1.msra.mxu0 %v314
    %352 = vmatprep.subr.mxu0 %v312
    %353 = vmatpush1.msra.mxu0 %v311
    %354 = vmatprep.subr.mxu0 %v309
    %355 = vmatpush1.msra.mxu0 %v308
    %356 = vmatprep.subr.mxu0 %v306
    %357 = vmatpush1.msra.mxu0 %v305
    %358 = vmatprep.subr.mxu0 %v303
    %359 = vmatpush1.msra.mxu0 %v302
    %360 = vmatprep.subr.mxu0 %v300
    %361 = vmatpush1.msra.mxu0 %v299
    %362 = vmatprep.subr.mxu0 %v297
    %363 = vmatpush1.msra.mxu0 %v296
    %364 = vmatprep.subr.mxu0 %v294
    %365 = vmatpush1.msra.mxu0 %v293
    %366 = vmatprep.subr.mxu0 %v291
    %367 = vmatpush1.msra.mxu0 %v290
    %368 = vmatprep.subr.mxu0 %v288
    %369 = vmatpush1.msra.mxu0 %v287
    %370 = vmatprep.subr.mxu0 %v285
    %371 = vmatpush1.msra.mxu0 %v284
    %372 = vmatprep.subr.mxu0 %v282
    %373 = vmatpush1.msra.mxu0 %v281
    %374 = vmatprep.subr.mxu0 %v279
    %375 = vmatpush1.msra.mxu0 %v278
    %376 = vmatprep.subr.mxu0 0.0
    %377 = vmatpush2.msra.mxu0 0.0
    %378 = vmatprep.subr.mxu0 0.0
    %379 = vmatpush2.msra.mxu0 0.0
    %380 = vmatprep.subr.mxu0 0.0
    %381 = vmatpush2.msra.mxu0 0.0
    %382 = vmatprep.subr.mxu0 0.0
    %383 = vmatpush2.msra.mxu0 0.0
    %384 = vmatprep.subr.mxu0 0.0
    %385 = vmatpush2.msra.mxu0 0.0
    %386 = vmatprep.subr.mxu0 0.0
    %387 = vmatpush2.msra.mxu0 0.0
    %388 = vmatprep.subr.mxu0 0.0
    %389 = vmatpush2.msra.mxu0 0.0
    %390 = vmatprep.subr.mxu0 0.0
    %391 = vmatpush2.msra.mxu0 0.0
    %392 = vmatprep.subr.mxu0 0.0
    %393 = vmatpush2.msra.mxu0 0.0
    %394 = vmatprep.subr.mxu0 0.0
    %395 = vmatpush2.msra.mxu0 0.0
    %396 = vmatprep.subr.mxu0 0.0
    %397 = vmatpush2.msra.mxu0 0.0
    %398 = vmatprep.subr.mxu0 0.0
    %399 = vmatpush2.msra.mxu0 0.0
    %400 = vmatprep.subr.mxu0 0.0
    %401 = vmatpush2.msra.mxu0 0.0
    %402 = vmatprep.subr.mxu0 0.0
    %403 = vmatpush2.msra.mxu0 0.0
    %404 = vmatprep.subr.mxu0 0.0
    %405 = vmatpush2.msra.mxu0 0.0
    %406 = vmatprep.subr.mxu0 0.0
    %407 = vmatpush2.msra.mxu0 0.0
    %408 = vmatprep.mubr.f32.mxu0 0.0
    %409 = vmatmul.mubr.f32.gmra.mxu0 %v276
    %v410 = vpop.f32.mrf.mxu0
    %v411 = vadd.f32 %v332, %v410
    %v412 = vpop.f32.mrf.mxu0
    %v413 = vadd.f32 %v336, %v412
    %414 = vdwg.mxu0
    %415 = vmatprep.subr.mxu0 0.0
    %416 = vmatpush1.msra.mxu0 %v325
    %417 = vmatprep.subr.mxu0 0.0
    %418 = vmatpush1.msra.mxu0 %v322
    %419 = vmatprep.subr.mxu0 0.0
    %420 = vmatpush1.msra.mxu0 %v319
    %421 = vmatprep.subr.mxu0 0.0
    %422 = vmatpush1.msra.mxu0 %v316
    %423 = vmatprep.subr.mxu0 0.0
    %424 = vmatpush1.msra.mxu0 %v313
    %425 = vmatprep.subr.mxu0 0.0
    %426 = vmatpush1.msra.mxu0 %v310
    %427 = vmatprep.subr.mxu0 0.0
    %428 = vmatpush1.msra.mxu0 %v307
    %429 = vmatprep.subr.mxu0 0.0
    %430 = vmatpush1.msra.mxu0 %v304
    %431 = vmatprep.subr.mxu0 0.0
    %432 = vmatpush1.msra.mxu0 %v301
    %433 = vmatprep.subr.mxu0 0.0
    %434 = vmatpush1.msra.mxu0 %v298
    %435 = vmatprep.subr.mxu0 0.0
    %436 = vmatpush1.msra.mxu0 %v295
    %437 = vmatprep.subr.mxu0 0.0
    %438 = vmatpush1.msra.mxu0 %v292
    %439 = vmatprep.subr.mxu0 0.0
    %440 = vmatpush1.msra.mxu0 %v289
    %441 = vmatprep.subr.mxu0 0.0
    %442 = vmatpush1.msra.mxu0 %v286
    %443 = vmatprep.subr.mxu0 0.0
    %444 = vmatpush1.msra.mxu0 %v283
    %445 = vmatprep.subr.mxu0 0.0
    %446 = vmatpush1.msra.mxu0 %v280
    %447 = vmatprep.subr.mxu0 0.0
    %448 = vmatpush2.msra.mxu0 0.0
    %449 = vmatprep.subr.mxu0 0.0
    %450 = vmatpush2.msra.mxu0 0.0
    %451 = vmatprep.subr.mxu0 0.0
    %452 = vmatpush2.msra.mxu0 0.0
    %453 = vmatprep.subr.mxu0 0.0
    %454 = vmatpush2.msra.mxu0 0.0
    %455 = vmatprep.subr.mxu0 0.0
    %456 = vmatpush2.msra.mxu0 0.0
    %457 = vmatprep.subr.mxu0 0.0
    %458 = vmatpush2.msra.mxu0 0.0
    %459 = vmatprep.subr.mxu0 0.0
    %460 = vmatpush2.msra.mxu0 0.0
    %461 = vmatprep.subr.mxu0 0.0
    %462 = vmatpush2.msra.mxu0 0.0
    %463 = vmatprep.subr.mxu0 0.0
    %464 = vmatpush2.msra.mxu0 0.0
    %465 = vmatprep.subr.mxu0 0.0
    %466 = vmatpush2.msra.mxu0 0.0
    %467 = vmatprep.subr.mxu0 0.0
    %468 = vmatpush2.msra.mxu0 0.0
    %469 = vmatprep.subr.mxu0 0.0
    %470 = vmatpush2.msra.mxu0 0.0
    %471 = vmatprep.subr.mxu0 0.0
    %472 = vmatpush2.msra.mxu0 0.0
    %473 = vmatprep.subr.mxu0 0.0
    %474 = vmatpush2.msra.mxu0 0.0
    %475 = vmatprep.subr.mxu0 0.0
    %476 = vmatpush2.msra.mxu0 0.0
    %477 = vmatprep.subr.mxu0 0.0
    %478 = vmatpush2.msra.mxu0 0.0
    %479 = vmatprep.mubr.f32.mxu0 0.0
    %480 = vmatmul.mubr.f32.gmra.mxu0 %v276
    %v481 = vpop.f32.mrf.mxu0
    %v482 = vadd.f32 %v340, %v481
    %v483 = vpop.f32.mrf.mxu0
    %484 = vdwg.mxu0
    %v485 = vxor.u32 %v411, 2147483648
    %v486 = vmul.f32 %v485, 1.442695
    %v487 = vpow.pop %v486
    %v488 = vadd.f32 %v487, 1.0
    %v489 = vrcp.pop %v488
    %v490 = vmul.f32 1.0, %v489
    %v491 = vmax.f32 %v413, 0.0
    %v492 = vsub.f32 %v491, %v482
    %v493 = vmul.f32 %v490, %v492
    %v494 = vadd.f32 %v482, %v493
    %495 = vst [vmem:[#allocation2] sm:$0xff] %v494
    // Predicated region
    $region30: #{tpu_custom_call.1} parent=1 // pred_check
      %p496 = pneg %p54
    $region31: #{tpu_custom_call.1} parent=1 // pred_check_branch
      %498 = sbr.rel (%p496) target = $region33
    $region32: #{tpu_custom_call.1} parent=1 // pred_region
      %499 = vst [vmem:[#allocation9] sm:$0xff] %v494
    $region33: #{tpu_custom_call.1} parent=1 // pred_fallthru
      _
    // Predicated region
    $region34: #{tpu_custom_call.1} parent=1 // pred_check
      _
    $region35: #{tpu_custom_call.1} parent=1 // pred_check_branch
      %501 = sbr.rel (0) target = $region37
    $region36: #{tpu_custom_call.1} parent=1 // pred_region
      %s503 = ssub.s32 128, 128
      %504 = vsyncadd [#allocation5], %s503
      %s506 = sshll.u32 [#allocation9], 4
      %s507 = int_to_ptr.vmem [resolvable:$true] %s506
      %509 = dma.vmem_to_hbm [thread:$0]  %s507, 128, %s3, [#allocation5]
    $region37: #{tpu_custom_call.1} parent=1 // pred_fallthru
      _
    // Predicated region
    $region38: #{tpu_custom_call.1} parent=1 // pred_check
      _
    $region39: #{tpu_custom_call.1} parent=1 // pred_check_branch
      %511 = sbr.rel (0) target = $region41
    $region40: #{tpu_custom_call.1} parent=1 // pred_region
      %512 = dma.done [#allocation5], 128
    $region41: #{tpu_custom_call.1} parent=1 // pred_fallthru
      _
    %513 = vsyncpa [#allocation4], 1
    %514 = vsyncpa [#allocation7], 1
    %515 = vsyncpa [#allocation5], 1

</llo_original>
